<compile_context>
chip_gen: v7x
topology: tpu7x:2x2x1
jax: 0.10.0
libtpu: 0.0.40
codegen_flags: <defaults>
</compile_context>

<pallas_src>
import functools

import jax
import jax.numpy as jnp
from jax.experimental import pallas as pl
from jax.experimental.pallas import tpu as pltpu

_LANE = 128
_SUBLANE = 8


def _round_up(n, m):
    return ((n + m - 1) // m) * m


# ----------------------------------------------------------------------------
# Kernel: fused MLP over a group of consecutive layers, one batch tile / step.
# ----------------------------------------------------------------------------
def _mlp_group_kernel(*refs, num_layers, final_sigmoid):
    """refs = (x, w0, b0, ..., w{L-1}, b{L-1}, out)."""
    x_ref = refs[0]
    o_ref = refs[-1]
    wb = refs[1:-1]

    h = x_ref[...]
    for li in range(num_layers):
        w = wb[2 * li][...]
        b = wb[2 * li + 1][...]            # [1, D_out] f32, broadcasts over rows
        # f32 accumulation on the MXU regardless of operand dtype.
        y = jnp.dot(h.astype(w.dtype), w, preferred_element_type=jnp.float32)
        y = y + b
        if li == num_layers - 1 and final_sigmoid:
            h = jax.nn.sigmoid(y)          # final Sigmoid (EUP)
        else:
            # TODO(synk): dropout is identity (eval mode); training-mode dropout
            # would use pltpu.prng_random_bits here.
            h = jnp.maximum(y, 0.0)        # ReLU
    o_ref[...] = h.astype(o_ref.dtype)


# ----------------------------------------------------------------------------
# One fused pallas_call over a group of layers.
# ----------------------------------------------------------------------------
def _fused_group_call(x_in, group_layers, final_sigmoid, bt, vmem_cap,
                      single_buffer_weights):
    B, d_in = x_in.shape
    compute_dtype = x_in.dtype
    n_out = group_layers[-1][0].shape[1]
    itemsize = jnp.dtype(compute_dtype).itemsize

    # Batch-tiled input / output; weights & biases are grid-invariant so they
    # are DMA'd once and stay VMEM-resident across the whole batch grid.
    inputs = [x_in]
    in_specs = [pl.BlockSpec((bt, d_in), lambda i: (i, 0))]
    weight_bytes = 0
    wb_kwargs = {}
    if single_buffer_weights:
        # Grid-invariant inputs do not need double buffering; halving their
        # VMEM footprint matters most on v7x (64 MiB VMEM).
        wb_kwargs = dict(pipeline_mode=pl.Buffered(1))
    for (w, b) in group_layers:
        inputs += [w, b]
        in_specs += [
            pl.BlockSpec(w.shape, lambda i: (0, 0), **wb_kwargs),
            pl.BlockSpec(b.shape, lambda i: (0, 0), **wb_kwargs),
        ]
        weight_bytes += int(w.size) * w.dtype.itemsize
        weight_bytes += int(b.size) * b.dtype.itemsize

    # Explicit VMEM budget: resident weights (x1 or x2 buffers) + double
    # buffered batch tiles + margin for in-kernel activations / scratch.
    nbuf = 1 if single_buffer_weights else 2
    io_bytes = 2 * bt * (d_in + n_out) * itemsize
    needed = nbuf * weight_bytes + io_bytes + (4 << 20)
    vmem_limit = int(min(int(0.9 * vmem_cap), max(needed, 32 << 20)))

    kernel = functools.partial(
        _mlp_group_kernel,
        num_layers=len(group_layers),
        final_sigmoid=final_sigmoid,
    )
    return pl.pallas_call(
        kernel,
        out_shape=jax.ShapeDtypeStruct((B, n_out), compute_dtype),
        grid=(pl.cdiv(B, bt),),
        in_specs=in_specs,
        out_specs=pl.BlockSpec((bt, n_out), lambda i: (i, 0)),
        compiler_params=pltpu.CompilerParams(
            dimension_semantics=("parallel",),
            vmem_limit_bytes=vmem_limit,
        ),
    )(*inputs)


# ----------------------------------------------------------------------------
# Host-side API.
# ----------------------------------------------------------------------------
def prepare_params(params, compute_dtype=jnp.bfloat16):
    """Once-per-model preparation (hoisted out of the per-call path).

    params: list of (W [D_in, D_out], b [D_out]) in forward order.
    Casts weights to `compute_dtype` (bf16 recommended on v6e/v7x; f32 for
    exact results), biases to f32 [1, D_out], and zero-pads ONLY the final
    layer's output columns to a 128-lane multiple so the HBM store is
    lane-dense.  Contraction / intermediate dims are left at true sizes.
    Returns (prepared_layers, out_dim).
    """
    prepared = []
    n = len(params)
    out_dim = params[-1][0].shape[1]
    for li, (w, b) in enumerate(params):
        w = jnp.asarray(w, compute_dtype)
        b = jnp.asarray(b, jnp.float32).reshape(1, -1)
        if li == n - 1:
            n_pad = _round_up(w.shape[1], _LANE)
            if n_pad != w.shape[1]:
                w = jnp.pad(w, ((0, 0), (0, n_pad - w.shape[1])))
                b = jnp.pad(b, ((0, 0), (0, n_pad - b.shape[1])))
        prepared.append((w, b))
    return prepared, out_dim


def _group_layers(layers, weight_budget_bytes):
    """Greedily split layers into groups whose (worst-case double-buffered)
    resident weight bytes fit the VMEM budget.  Normally a single group."""
    groups, cur, cur_bytes = [], [], 0
    for (w, b) in layers:
        lb = 2 * (int(w.size) * w.dtype.itemsize + int(b.size) * b.dtype.itemsize)
        if cur and cur_bytes + lb > weight_budget_bytes:
            groups.append(cur)
            cur, cur_bytes = [], 0
        # TODO(synk): a single layer larger than the budget would need a
        # K/N-tiled 2-D grid ("parallel" batch x "arbitrary" reduction)
        # fallback with a VMEM accumulator; not implemented.
        cur.append((w, b))
        cur_bytes += lb
    groups.append(cur)
    return groups


def net_forward(x, prepared, *, b_tile=1024):
    """Pallas forward of Net (eval mode).

    x: [B, start_dim].
    prepared: output of prepare_params().
    """
    layers, out_dim = prepared
    compute_dtype = layers[0][0].dtype
    B, d0 = x.shape
    assert d0 == layers[0][0].shape[0]

    itemsize = jnp.dtype(compute_dtype).itemsize
    # Sublane packing: 8 rows for 32-bit, 16 for bf16 (sub-32-bit packs rows).
    sub = max(_SUBLANE, 32 // max(itemsize, 1))
    # Batch tile: large to amortize per-step overhead, rounded to the sublane
    # packing, and capped at ~B/2 so the "parallel" grid has >=2 steps when
    # possible (keeps both v7x TensorCores busy).  No padding of B.
    bt = max(sub, min(b_tile, _round_up(pl.cdiv(B, 2), sub)))

    try:
        vmem_cap = int(pltpu.get_tpu_info().vmem_capacity_bytes)
    except Exception:
        vmem_cap = 64 << 20  # conservative (v7x per-TensorCore VMEM)

    # Keep the double-buffered batch tiles well under the budget.
    widths = [d0] + [w.shape[1] for w, _ in layers]
    max_w = max(widths)
    while bt > sub and 4 * bt * max_w * itemsize > int(0.3 * vmem_cap):
        bt = _round_up(bt // 2, sub)

    groups = _group_layers(layers, int(0.4 * vmem_cap))

    h = x.astype(compute_dtype)
    for gi, group in enumerate(groups):
        final = gi == len(groups) - 1
        try:
            h = _fused_group_call(h, group, final, bt, vmem_cap,
                                  single_buffer_weights=True)
        except Exception:
            # pl.Buffered(1) (single-buffered grid-invariant weights) not
            # supported by this JAX version -> default double buffering.
            h = _fused_group_call(h, group, final, bt, vmem_cap,
                                  single_buffer_weights=False)
    # Only the final column padding is sliced off; B was never padded.
    return h[:, :out_dim]


def init_net_params(key, start_dim, hidden_dim, out_dim, num_hidden_layers):
    """Deterministic PyTorch-style (uniform +-1/sqrt(fan_in)) init.

    Returns list of (W [D_in, D_out], b [D_out]) in forward order.
    """
    dims = [start_dim] + [hidden_dim] * (1 + num_hidden_layers) + [out_dim]
    params = []
    for i in range(len(dims) - 1):
        d_in, d_out = dims[i], dims[i + 1]
        key, kw, kb = jax.random.split(key, 3)
        bound = 1.0 / jnp.sqrt(float(d_in))
        w = jax.random.uniform(kw, (d_in, d_out), jnp.float32, -bound, bound)
        b = jax.random.uniform(kb, (d_out,), jnp.float32, -bound, bound)
        params.append((w, b))
    return params


if __name__ == "__main__":
    # Small shapes consistent with the module.
    batch = 8
    start_dim = 32
    hidden_dim = 64
    out_dim = 16
    num_hidden_layers = 2
    dropout = 0.1  # unused in eval-mode forward (identity)

    key = jax.random.PRNGKey(0)
    key, kx = jax.random.split(key)
    x = jax.random.normal(kx, (batch, start_dim), dtype=jnp.float32)
    params = init_net_params(key, start_dim, hidden_dim, out_dim,
                             num_hidden_layers)

    # Pure-JAX reference (f32).
    ref = x
    for w, b in params[:-1]:
        ref = jnp.maximum(ref @ w + b, 0.0)
    w, b = params[-1]
    ref = jax.nn.sigmoid(ref @ w + b)

    # f32 path: exact-ish check.
    prep_f32 = prepare_params(params, compute_dtype=jnp.float32)
    out = jax.block_until_ready(net_forward(x, prep_f32))
    assert out.shape == (batch, out_dim)
    assert jnp.allclose(out, ref, atol=1e-5, rtol=1e-5)

    # bf16 operand path (recommended on v6e/v7x: halves weight/activation DMA
    # and VMEM residency; accumulation stays f32).  Looser tolerance expected.
    prep_bf16 = prepare_params(params)  # default compute dtype = bfloat16
    out_bf16 = jax.block_until_ready(net_forward(x, prep_bf16))
    assert out_bf16.shape == (batch, out_dim)
    assert jnp.allclose(out_bf16.astype(jnp.float32), ref, atol=5e-2)

    print("KERNEL_OK")
</pallas_src>

<mosaic_0001>
module attributes {stable_mosaic.version = 11 : i64} {
  func.func @_mlp_group_kernel(%arg0: i32, %arg1: memref<8x32xf32, #tpu.memory_space<vmem>>, %arg2: memref<32x64xf32, #tpu.memory_space<vmem>>, %arg3: memref<1x64xf32, #tpu.memory_space<vmem>>, %arg4: memref<64x64xf32, #tpu.memory_space<vmem>>, %arg5: memref<1x64xf32, #tpu.memory_space<vmem>>, %arg6: memref<64x64xf32, #tpu.memory_space<vmem>>, %arg7: memref<1x64xf32, #tpu.memory_space<vmem>>, %arg8: memref<64x128xf32, #tpu.memory_space<vmem>>, %arg9: memref<1x128xf32, #tpu.memory_space<vmem>>, %arg10: memref<8x128xf32, #tpu.memory_space<vmem>>) attributes {dimension_semantics = [#tpu.dimension_semantics<parallel>], iteration_bounds = array<i64: 1>, scalar_prefetch = 0 : i64, scratch_operands = 0 : i64, tpu.core_type = #tpu.core_type<tc>, window_params = [{transform_indices = @transform_0, window_bounds = array<i64: 8, 32>}, {pipeline_mode = #tpu.pipeline_mode<synchronous>, transform_indices = @transform_1, window_bounds = array<i64: 32, 64>}, {pipeline_mode = #tpu.pipeline_mode<synchronous>, transform_indices = @transform_2, window_bounds = array<i64: 1, 64>}, {pipeline_mode = #tpu.pipeline_mode<synchronous>, transform_indices = @transform_3, window_bounds = array<i64: 64, 64>}, {pipeline_mode = #tpu.pipeline_mode<synchronous>, transform_indices = @transform_4, window_bounds = array<i64: 1, 64>}, {pipeline_mode = #tpu.pipeline_mode<synchronous>, transform_indices = @transform_5, window_bounds = array<i64: 64, 64>}, {pipeline_mode = #tpu.pipeline_mode<synchronous>, transform_indices = @transform_6, window_bounds = array<i64: 1, 64>}, {pipeline_mode = #tpu.pipeline_mode<synchronous>, transform_indices = @transform_7, window_bounds = array<i64: 64, 128>}, {pipeline_mode = #tpu.pipeline_mode<synchronous>, transform_indices = @transform_8, window_bounds = array<i64: 1, 128>}, {transform_indices = @transform_9, window_bounds = array<i64: 8, 128>}]} {
    %c0 = arith.constant 0 : index
    %c0_0 = arith.constant 0 : index
    %0 = vector.load %arg1[%c0, %c0_0] : memref<8x32xf32, #tpu.memory_space<vmem>>, vector<8x32xf32>
    %c0_1 = arith.constant 0 : index
    %c0_2 = arith.constant 0 : index
    %1 = vector.load %arg2[%c0_1, %c0_2] : memref<32x64xf32, #tpu.memory_space<vmem>>, vector<32x64xf32>
    %c0_3 = arith.constant 0 : index
    %c0_4 = arith.constant 0 : index
    %2 = vector.load %arg3[%c0_3, %c0_4] : memref<1x64xf32, #tpu.memory_space<vmem>>, vector<1x64xf32>
    %cst = arith.constant dense<0.000000e+00> : vector<8x64xf32>
    %3 = tpu.matmul %0, %1, %cst {dimension_numbers = #tpu.dot_dimension_numbers<[1], [0], [0], [1], [0, 0, 1, 1], [], []>} : vector<8x32xf32>, vector<32x64xf32>, vector<8x64xf32> -> vector<8x64xf32>
    %4 = vector.broadcast %2 : vector<1x64xf32> to vector<8x64xf32>
    %5 = arith.addf %3, %4 : vector<8x64xf32>
    %cst_5 = arith.constant 0.000000e+00 : f32
    %6 = vector.broadcast %cst_5 : f32 to vector<8x64xf32>
    %7 = arith.maximumf %5, %6 : vector<8x64xf32>
    %c0_6 = arith.constant 0 : index
    %c0_7 = arith.constant 0 : index
    %8 = vector.load %arg4[%c0_6, %c0_7] : memref<64x64xf32, #tpu.memory_space<vmem>>, vector<64x64xf32>
    %c0_8 = arith.constant 0 : index
    %c0_9 = arith.constant 0 : index
    %9 = vector.load %arg5[%c0_8, %c0_9] : memref<1x64xf32, #tpu.memory_space<vmem>>, vector<1x64xf32>
    %cst_10 = arith.constant dense<0.000000e+00> : vector<8x64xf32>
    %10 = tpu.matmul %7, %8, %cst_10 {dimension_numbers = #tpu.dot_dimension_numbers<[1], [0], [0], [1], [0, 0, 1, 1], [], []>} : vector<8x64xf32>, vector<64x64xf32>, vector<8x64xf32> -> vector<8x64xf32>
    %11 = vector.broadcast %9 : vector<1x64xf32> to vector<8x64xf32>
    %12 = arith.addf %10, %11 : vector<8x64xf32>
    %cst_11 = arith.constant 0.000000e+00 : f32
    %13 = vector.broadcast %cst_11 : f32 to vector<8x64xf32>
    %14 = arith.maximumf %12, %13 : vector<8x64xf32>
    %c0_12 = arith.constant 0 : index
    %c0_13 = arith.constant 0 : index
    %15 = vector.load %arg6[%c0_12, %c0_13] : memref<64x64xf32, #tpu.memory_space<vmem>>, vector<64x64xf32>
    %c0_14 = arith.constant 0 : index
    %c0_15 = arith.constant 0 : index
    %16 = vector.load %arg7[%c0_14, %c0_15] : memref<1x64xf32, #tpu.memory_space<vmem>>, vector<1x64xf32>
    %cst_16 = arith.constant dense<0.000000e+00> : vector<8x64xf32>
    %17 = tpu.matmul %14, %15, %cst_16 {dimension_numbers = #tpu.dot_dimension_numbers<[1], [0], [0], [1], [0, 0, 1, 1], [], []>} : vector<8x64xf32>, vector<64x64xf32>, vector<8x64xf32> -> vector<8x64xf32>
    %18 = vector.broadcast %16 : vector<1x64xf32> to vector<8x64xf32>
    %19 = arith.addf %17, %18 : vector<8x64xf32>
    %cst_17 = arith.constant 0.000000e+00 : f32
    %20 = vector.broadcast %cst_17 : f32 to vector<8x64xf32>
    %21 = arith.maximumf %19, %20 : vector<8x64xf32>
    %c0_18 = arith.constant 0 : index
    %c0_19 = arith.constant 0 : index
    %22 = vector.load %arg8[%c0_18, %c0_19] : memref<64x128xf32, #tpu.memory_space<vmem>>, vector<64x128xf32>
    %c0_20 = arith.constant 0 : index
    %c0_21 = arith.constant 0 : index
    %23 = vector.load %arg9[%c0_20, %c0_21] : memref<1x128xf32, #tpu.memory_space<vmem>>, vector<1x128xf32>
    %cst_22 = arith.constant dense<0.000000e+00> : vector<8x128xf32>
    %24 = tpu.matmul %21, %22, %cst_22 {dimension_numbers = #tpu.dot_dimension_numbers<[1], [0], [0], [1], [0, 0, 1, 1], [], []>} : vector<8x64xf32>, vector<64x128xf32>, vector<8x128xf32> -> vector<8x128xf32>
    %25 = vector.broadcast %23 : vector<1x128xf32> to vector<8x128xf32>
    %26 = arith.addf %24, %25 : vector<8x128xf32>
    %27 = arith.negf %26 : vector<8x128xf32>
    %28 = math.exp %27 : vector<8x128xf32>
    %cst_23 = arith.constant 1.000000e+00 : f32
    %29 = vector.broadcast %cst_23 : f32 to vector<8x128xf32>
    %30 = arith.addf %29, %28 : vector<8x128xf32>
    %31 = arith.divf %29, %30 : vector<8x128xf32>
    %c0_24 = arith.constant 0 : index
    %c0_25 = arith.constant 0 : index
    %32 = vector.load %arg10[%c0_24, %c0_25] : memref<8x128xf32, #tpu.memory_space<vmem>>, vector<8x128xf32>
    tpu.vector_store %arg10[%c0_24, %c0_25], %31 {strides = array<i32>} : memref<8x128xf32, #tpu.memory_space<vmem>>, vector<8x128xf32>,
    return
  }
  func.func @transform_0(%arg0: i32) -> (i32, i32) {
    %c0_i32 = arith.constant 0 : i32
    %c0_i32_0 = arith.constant 0 : i32
    return %arg0, %c0_i32 : i32, i32
  }
  func.func @transform_1(%arg0: i32) -> (i32, i32) {
    %c0_i32 = arith.constant 0 : i32
    %c0_i32_0 = arith.constant 0 : i32
    %c0_i32_1 = arith.constant 0 : i32
    return %c0_i32, %c0_i32_0 : i32, i32
  }
  func.func @transform_2(%arg0: i32) -> (i32, i32) {
    %c0_i32 = arith.constant 0 : i32
    %c0_i32_0 = arith.constant 0 : i32
    %c0_i32_1 = arith.constant 0 : i32
    return %c0_i32, %c0_i32_0 : i32, i32
  }
  func.func @transform_3(%arg0: i32) -> (i32, i32) {
    %c0_i32 = arith.constant 0 : i32
    %c0_i32_0 = arith.constant 0 : i32
    %c0_i32_1 = arith.constant 0 : i32
    return %c0_i32, %c0_i32_0 : i32, i32
  }
  func.func @transform_4(%arg0: i32) -> (i32, i32) {
    %c0_i32 = arith.constant 0 : i32
    %c0_i32_0 = arith.constant 0 : i32
    %c0_i32_1 = arith.constant 0 : i32
    return %c0_i32, %c0_i32_0 : i32, i32
  }
  func.func @transform_5(%arg0: i32) -> (i32, i32) {
    %c0_i32 = arith.constant 0 : i32
    %c0_i32_0 = arith.constant 0 : i32
    %c0_i32_1 = arith.constant 0 : i32
    return %c0_i32, %c0_i32_0 : i32, i32
  }
  func.func @transform_6(%arg0: i32) -> (i32, i32) {
    %c0_i32 = arith.constant 0 : i32
    %c0_i32_0 = arith.constant 0 : i32
    %c0_i32_1 = arith.constant 0 : i32
    return %c0_i32, %c0_i32_0 : i32, i32
  }
  func.func @transform_7(%arg0: i32) -> (i32, i32) {
    %c0_i32 = arith.constant 0 : i32
    %c0_i32_0 = arith.constant 0 : i32
    %c0_i32_1 = arith.constant 0 : i32
    return %c0_i32, %c0_i32_0 : i32, i32
  }
  func.func @transform_8(%arg0: i32) -> (i32, i32) {
    %c0_i32 = arith.constant 0 : i32
    %c0_i32_0 = arith.constant 0 : i32
    %c0_i32_1 = arith.constant 0 : i32
    return %c0_i32, %c0_i32_0 : i32, i32
  }
  func.func @transform_9(%arg0: i32) -> (i32, i32) {
    %c0_i32 = arith.constant 0 : i32
    %c0_i32_0 = arith.constant 0 : i32
    return %arg0, %c0_i32 : i32, i32
  }
}

module attributes {stable_mosaic.version = 11 : i64} {
  func.func @_mlp_group_kernel(%arg0: i32, %arg1: memref<8x32xf32, #tpu.memory_space<vmem>>, %arg2: memref<32x64xf32, #tpu.memory_space<vmem>>, %arg3: memref<1x64xf32, #tpu.memory_space<vmem>>, %arg4: memref<64x64xf32, #tpu.memory_space<vmem>>, %arg5: memref<1x64xf32, #tpu.memory_space<vmem>>, %arg6: memref<64x64xf32, #tpu.memory_space<vmem>>, %arg7: memref<1x64xf32, #tpu.memory_space<vmem>>, %arg8: memref<64x128xf32, #tpu.memory_space<vmem>>, %arg9: memref<1x128xf32, #tpu.memory_space<vmem>>, %arg10: memref<8x128xf32, #tpu.memory_space<vmem>>) attributes {dimension_semantics = [#tpu.dimension_semantics<parallel>], iteration_bounds = array<i64: 1>, scalar_prefetch = 0 : i64, scratch_operands = 0 : i64, tpu.core_type = #tpu.core_type<tc>, window_params = [{transform_indices = @transform_0, window_bounds = array<i64: 8, 32>}, {pipeline_mode = #tpu.pipeline_mode<synchronous>, transform_indices = @transform_1, window_bounds = array<i64: 32, 64>}, {pipeline_mode = #tpu.pipeline_mode<synchronous>, transform_indices = @transform_2, window_bounds = array<i64: 1, 64>}, {pipeline_mode = #tpu.pipeline_mode<synchronous>, transform_indices = @transform_3, window_bounds = array<i64: 64, 64>}, {pipeline_mode = #tpu.pipeline_mode<synchronous>, transform_indices = @transform_4, window_bounds = array<i64: 1, 64>}, {pipeline_mode = #tpu.pipeline_mode<synchronous>, transform_indices = @transform_5, window_bounds = array<i64: 64, 64>}, {pipeline_mode = #tpu.pipeline_mode<synchronous>, transform_indices = @transform_6, window_bounds = array<i64: 1, 64>}, {pipeline_mode = #tpu.pipeline_mode<synchronous>, transform_indices = @transform_7, window_bounds = array<i64: 64, 128>}, {pipeline_mode = #tpu.pipeline_mode<synchronous>, transform_indices = @transform_8, window_bounds = array<i64: 1, 128>}, {transform_indices = @transform_9, window_bounds = array<i64: 8, 128>}]} {
    %c0 = arith.constant 0 : index
    %c0_0 = arith.constant 0 : index
    %0 = vector.load %arg1[%c0, %c0_0] : memref<8x32xf32, #tpu.memory_space<vmem>>, vector<8x32xf32>
    %c0_1 = arith.constant 0 : index
    %c0_2 = arith.constant 0 : index
    %1 = vector.load %arg2[%c0_1, %c0_2] : memref<32x64xf32, #tpu.memory_space<vmem>>, vector<32x64xf32>
    %c0_3 = arith.constant 0 : index
    %c0_4 = arith.constant 0 : index
    %2 = vector.load %arg3[%c0_3, %c0_4] : memref<1x64xf32, #tpu.memory_space<vmem>>, vector<1x64xf32>
    %cst = arith.constant dense<0.000000e+00> : vector<8x64xf32>
    %3 = tpu.matmul %0, %1, %cst {dimension_numbers = #tpu.dot_dimension_numbers<[1], [0], [0], [1], [0, 0, 1, 1], [], []>} : vector<8x32xf32>, vector<32x64xf32>, vector<8x64xf32> -> vector<8x64xf32>
    %4 = vector.broadcast %2 : vector<1x64xf32> to vector<8x64xf32>
    %5 = arith.addf %3, %4 : vector<8x64xf32>
    %cst_5 = arith.constant 0.000000e+00 : f32
    %6 = vector.broadcast %cst_5 : f32 to vector<8x64xf32>
    %7 = arith.maximumf %5, %6 : vector<8x64xf32>
    %c0_6 = arith.constant 0 : index
    %c0_7 = arith.constant 0 : index
    %8 = vector.load %arg4[%c0_6, %c0_7] : memref<64x64xf32, #tpu.memory_space<vmem>>, vector<64x64xf32>
    %c0_8 = arith.constant 0 : index
    %c0_9 = arith.constant 0 : index
    %9 = vector.load %arg5[%c0_8, %c0_9] : memref<1x64xf32, #tpu.memory_space<vmem>>, vector<1x64xf32>
    %cst_10 = arith.constant dense<0.000000e+00> : vector<8x64xf32>
    %10 = tpu.matmul %7, %8, %cst_10 {dimension_numbers = #tpu.dot_dimension_numbers<[1], [0], [0], [1], [0, 0, 1, 1], [], []>} : vector<8x64xf32>, vector<64x64xf32>, vector<8x64xf32> -> vector<8x64xf32>
    %11 = vector.broadcast %9 : vector<1x64xf32> to vector<8x64xf32>
    %12 = arith.addf %10, %11 : vector<8x64xf32>
    %cst_11 = arith.constant 0.000000e+00 : f32
    %13 = vector.broadcast %cst_11 : f32 to vector<8x64xf32>
    %14 = arith.maximumf %12, %13 : vector<8x64xf32>
    %c0_12 = arith.constant 0 : index
    %c0_13 = arith.constant 0 : index
    %15 = vector.load %arg6[%c0_12, %c0_13] : memref<64x64xf32, #tpu.memory_space<vmem>>, vector<64x64xf32>
    %c0_14 = arith.constant 0 : index
    %c0_15 = arith.constant 0 : index
    %16 = vector.load %arg7[%c0_14, %c0_15] : memref<1x64xf32, #tpu.memory_space<vmem>>, vector<1x64xf32>
    %cst_16 = arith.constant dense<0.000000e+00> : vector<8x64xf32>
    %17 = tpu.matmul %14, %15, %cst_16 {dimension_numbers = #tpu.dot_dimension_numbers<[1], [0], [0], [1], [0, 0, 1, 1], [], []>} : vector<8x64xf32>, vector<64x64xf32>, vector<8x64xf32> -> vector<8x64xf32>
    %18 = vector.broadcast %16 : vector<1x64xf32> to vector<8x64xf32>
    %19 = arith.addf %17, %18 : vector<8x64xf32>
    %cst_17 = arith.constant 0.000000e+00 : f32
    %20 = vector.broadcast %cst_17 : f32 to vector<8x64xf32>
    %21 = arith.maximumf %19, %20 : vector<8x64xf32>
    %c0_18 = arith.constant 0 : index
    %c0_19 = arith.constant 0 : index
    %22 = vector.load %arg8[%c0_18, %c0_19] : memref<64x128xf32, #tpu.memory_space<vmem>>, vector<64x128xf32>
    %c0_20 = arith.constant 0 : index
    %c0_21 = arith.constant 0 : index
    %23 = vector.load %arg9[%c0_20, %c0_21] : memref<1x128xf32, #tpu.memory_space<vmem>>, vector<1x128xf32>
    %cst_22 = arith.constant dense<0.000000e+00> : vector<8x128xf32>
    %24 = tpu.matmul %21, %22, %cst_22 {dimension_numbers = #tpu.dot_dimension_numbers<[1], [0], [0], [1], [0, 0, 1, 1], [], []>} : vector<8x64xf32>, vector<64x128xf32>, vector<8x128xf32> -> vector<8x128xf32>
    %25 = vector.broadcast %23 : vector<1x128xf32> to vector<8x128xf32>
    %26 = arith.addf %24, %25 : vector<8x128xf32>
    %27 = arith.negf %26 : vector<8x128xf32>
    %28 = math.exp %27 : vector<8x128xf32>
    %cst_23 = arith.constant 1.000000e+00 : f32
    %29 = vector.broadcast %cst_23 : f32 to vector<8x128xf32>
    %30 = arith.addf %29, %28 : vector<8x128xf32>
    %31 = arith.divf %29, %30 : vector<8x128xf32>
    %c0_24 = arith.constant 0 : index
    %c0_25 = arith.constant 0 : index
    %32 = vector.load %arg10[%c0_24, %c0_25] : memref<8x128xf32, #tpu.memory_space<vmem>>, vector<8x128xf32>
    tpu.vector_store %arg10[%c0_24, %c0_25], %31 {strides = array<i32>} : memref<8x128xf32, #tpu.memory_space<vmem>>, vector<8x128xf32>,
    return
  }
  func.func @transform_0(%arg0: i32) -> (i32, i32) {
    %c0_i32 = arith.constant 0 : i32
    %c0_i32_0 = arith.constant 0 : i32
    return %arg0, %c0_i32 : i32, i32
  }
  func.func @transform_1(%arg0: i32) -> (i32, i32) {
    %c0_i32 = arith.constant 0 : i32
    %c0_i32_0 = arith.constant 0 : i32
    %c0_i32_1 = arith.constant 0 : i32
    return %c0_i32, %c0_i32_0 : i32, i32
  }
  func.func @transform_2(%arg0: i32) -> (i32, i32) {
    %c0_i32 = arith.constant 0 : i32
    %c0_i32_0 = arith.constant 0 : i32
    %c0_i32_1 = arith.constant 0 : i32
    return %c0_i32, %c0_i32_0 : i32, i32
  }
  func.func @transform_3(%arg0: i32) -> (i32, i32) {
    %c0_i32 = arith.constant 0 : i32
    %c0_i32_0 = arith.constant 0 : i32
    %c0_i32_1 = arith.constant 0 : i32
    return %c0_i32, %c0_i32_0 : i32, i32
  }
  func.func @transform_4(%arg0: i32) -> (i32, i32) {
    %c0_i32 = arith.constant 0 : i32
    %c0_i32_0 = arith.constant 0 : i32
    %c0_i32_1 = arith.constant 0 : i32
    return %c0_i32, %c0_i32_0 : i32, i32
  }
  func.func @transform_5(%arg0: i32) -> (i32, i32) {
    %c0_i32 = arith.constant 0 : i32
    %c0_i32_0 = arith.constant 0 : i32
    %c0_i32_1 = arith.constant 0 : i32
    return %c0_i32, %c0_i32_0 : i32, i32
  }
  func.func @transform_6(%arg0: i32) -> (i32, i32) {
    %c0_i32 = arith.constant 0 : i32
    %c0_i32_0 = arith.constant 0 : i32
    %c0_i32_1 = arith.constant 0 : i32
    return %c0_i32, %c0_i32_0 : i32, i32
  }
  func.func @transform_7(%arg0: i32) -> (i32, i32) {
    %c0_i32 = arith.constant 0 : i32
    %c0_i32_0 = arith.constant 0 : i32
    %c0_i32_1 = arith.constant 0 : i32
    return %c0_i32, %c0_i32_0 : i32, i32
  }
  func.func @transform_8(%arg0: i32) -> (i32, i32) {
    %c0_i32 = arith.constant 0 : i32
    %c0_i32_0 = arith.constant 0 : i32
    %c0_i32_1 = arith.constant 0 : i32
    return %c0_i32, %c0_i32_0 : i32, i32
  }
  func.func @transform_9(%arg0: i32) -> (i32, i32) {
    %c0_i32 = arith.constant 0 : i32
    %c0_i32_0 = arith.constant 0 : i32
    return %arg0, %c0_i32 : i32, i32
  }
}

</mosaic_0001>

<llo_original>
// kernel: tpu_custom_call.1
$region0: #{tpu_custom_call.1}
  #allocation0 [shape = 'u32[]', space=smem, size = 0x4, offset = 0x4, fixed_abs, tag = 'smem constant byte address 0x4 - core index']
  #allocation1 [shape = 'u32[144,128]{1,0:T(1,128)}', space=vmem, size = 0x12000, scoped, tag = 'internal scratch']
  %s0 = inlined_call_operand.hbm [shape: f32[8,32], index: 0, kind: input, shape index: {}]
  %s1 = inlined_call_operand.hbm [shape: f32[32,64], index: 1, kind: input, shape index: {}]
  %s2 = inlined_call_operand.vmem [shape: f32[1,64], index: 2, kind: input, shape index: {}]
  %s3 = inlined_call_operand.hbm [shape: f32[64,64], index: 3, kind: input, shape index: {}]
  %s4 = inlined_call_operand.vmem [shape: f32[1,64], index: 4, kind: input, shape index: {}]
  %s5 = inlined_call_operand.hbm [shape: f32[64,64], index: 5, kind: input, shape index: {}]
  %s6 = inlined_call_operand.vmem [shape: f32[1,64], index: 6, kind: input, shape index: {}]
  %s7 = inlined_call_operand.hbm [shape: f32[64,128], index: 7, kind: input, shape index: {}]
  %s8 = inlined_call_operand.vmem [shape: f32[1,128], index: 8, kind: input, shape index: {}]
  %s9 = inlined_call_operand.hbm [shape: f32[8,128], index: 9, kind: output, shape index: {}]
  %s10 = sld [smem:[#allocation0]]
  $region66: #{tpu_custom_call.1} parent=0
    _
  %s12 = ssub.s32 1, %s10
  %s13 = scalar_select 0, %s12, %s10
  $region1: #{tpu_custom_call.1} parent=0
    #allocation2 [shape = 'u8[4096]{0}', space=vmem, size = 0x1000, scoped, tag = 'input window, operand 0, single buffered']
    #allocation3 [shape = 's32[1]{0}', space=sflag, size = 0x4, scoped, tag = 'scoped memory for tpu_custom_call.1']
    #allocation4 [shape = 's32[1]{0}', space=sflag, size = 0x4, scoped, tag = 'scoped memory for tpu_custom_call.1']
    #allocation5 [shape = 'u8[16384]{0}', space=vmem, size = 0x4000, scoped, tag = 'input window, operand 1, single buffered']
    #allocation6 [shape = 's32[1]{0}', space=sflag, size = 0x4, scoped, tag = 'scoped memory for tpu_custom_call.1']
    #allocation7 [shape = 'u8[32768]{0}', space=vmem, size = 0x8000, scoped, tag = 'input window, operand 3, single buffered']
    #allocation8 [shape = 'u8[32768]{0}', space=vmem, size = 0x8000, scoped, tag = 'input window, operand 5, single buffered']
    #allocation9 [shape = 's32[1]{0}', space=sflag, size = 0x4, scoped, tag = 'scoped memory for tpu_custom_call.1']
    #allocation10 [shape = 'u8[32768]{0}', space=vmem, size = 0x8000, scoped, tag = 'input window, operand 7, single buffered']
    #allocation11 [shape = 'u8[4096]{0}', space=vmem, size = 0x1000, scoped, tag = 'output window, operand 0, single buffered']
    %14 = vsyncpa [#allocation3], 0
    %15 = vsyncpa [#allocation6], 0
    %16 = vsyncpa [#allocation9], 0
    %17 = vsyncpa [#allocation4], 0
    // Predicated region
    $region2: #{tpu_custom_call.1} parent=1 // pred_check
      _
    $region3: #{tpu_custom_call.1} parent=1 // pred_check_branch
      %19 = sbr.rel (0) target = $region5
    $region4: #{tpu_custom_call.1} parent=1 // pred_region
      %s21 = ssub.s32 128, 128
      %22 = vsyncadd [#allocation3], %s21
      %s24 = sshll.u32 [#allocation2], 4
      %s25 = int_to_ptr.vmem [resolvable:$true] %s24
      %27 = dma.hbm_to_vmem [thread:$0]  %s0, 128, %s25, [#allocation3]
    $region5: #{tpu_custom_call.1} parent=1 // pred_fallthru
      _
    // Predicated region
    $region6: #{tpu_custom_call.1} parent=1 // pred_check
      _
    $region7: #{tpu_custom_call.1} parent=1 // pred_check_branch
      %29 = sbr.rel (0) target = $region9
    $region8: #{tpu_custom_call.1} parent=1 // pred_region
      %s31 = ssub.s32 512, 512
      %32 = vsyncadd [#allocation6], %s31
      %s33 = sshll.u32 [#allocation5], 4
      %s34 = int_to_ptr.vmem [resolvable:$true] %s33
      %39 = dma.hbm_to_vmem [thread:$0]  %s1, 512, %s34, [#allocation6], 128, 128, 8
    $region9: #{tpu_custom_call.1} parent=1 // pred_fallthru
      _
    // Predicated region
    $region10: #{tpu_custom_call.1} parent=1 // pred_check
      _
    $region11: #{tpu_custom_call.1} parent=1 // pred_check_branch
      %41 = sbr.rel (0) target = $region13
    $region12: #{tpu_custom_call.1} parent=1 // pred_region
      _
    $region13: #{tpu_custom_call.1} parent=1 // pred_fallthru
      _
    // Predicated region
    $region14: #{tpu_custom_call.1} parent=1 // pred_check
      _
    $region15: #{tpu_custom_call.1} parent=1 // pred_check_branch
      %43 = sbr.rel (0) target = $region17
    $region16: #{tpu_custom_call.1} parent=1 // pred_region
      %s45 = ssub.s32 1024, 1024
      %46 = vsyncadd [#allocation6], %s45
      %s47 = sshll.u32 [#allocation7], 4
      %s48 = int_to_ptr.vmem [resolvable:$true] %s47
      %53 = dma.hbm_to_vmem [thread:$0]  %s3, 1024, %s48, [#allocation6], 128, 128, 8
    $region17: #{tpu_custom_call.1} parent=1 // pred_fallthru
      _
    // Predicated region
    $region18: #{tpu_custom_call.1} parent=1 // pred_check
      _
    $region19: #{tpu_custom_call.1} parent=1 // pred_check_branch
      %55 = sbr.rel (0) target = $region21
    $region20: #{tpu_custom_call.1} parent=1 // pred_region
      _
    $region21: #{tpu_custom_call.1} parent=1 // pred_fallthru
      _
    // Predicated region
    $region22: #{tpu_custom_call.1} parent=1 // pred_check
      _
    $region23: #{tpu_custom_call.1} parent=1 // pred_check_branch
      %57 = sbr.rel (0) target = $region25
    $region24: #{tpu_custom_call.1} parent=1 // pred_region
      %s59 = ssub.s32 1024, 1024
      %60 = vsyncadd [#allocation9], %s59
      %s61 = sshll.u32 [#allocation8], 4
      %s62 = int_to_ptr.vmem [resolvable:$true] %s61
      %67 = dma.hbm_to_vmem [thread:$0]  %s5, 1024, %s62, [#allocation9], 128, 128, 8
    $region25: #{tpu_custom_call.1} parent=1 // pred_fallthru
      _
    // Predicated region
    $region26: #{tpu_custom_call.1} parent=1 // pred_check
      _
    $region27: #{tpu_custom_call.1} parent=1 // pred_check_branch
      %69 = sbr.rel (0) target = $region29
    $region28: #{tpu_custom_call.1} parent=1 // pred_region
      _
    $region29: #{tpu_custom_call.1} parent=1 // pred_fallthru
      _
    // Predicated region
    $region30: #{tpu_custom_call.1} parent=1 // pred_check
      _
    $region31: #{tpu_custom_call.1} parent=1 // pred_check_branch
      %71 = sbr.rel (0) target = $region33
    $region32: #{tpu_custom_call.1} parent=1 // pred_region
      %s73 = ssub.s32 1024, 1024
      %74 = vsyncadd [#allocation9], %s73
      %s75 = sshll.u32 [#allocation10], 4
      %s76 = int_to_ptr.vmem [resolvable:$true] %s75
      %81 = dma.hbm_to_vmem [thread:$0]  %s7, 1024, %s76, [#allocation9], 128, 128, 8
    $region33: #{tpu_custom_call.1} parent=1 // pred_fallthru
      _
    // Predicated region
    $region34: #{tpu_custom_call.1} parent=1 // pred_check
      _
    $region35: #{tpu_custom_call.1} parent=1 // pred_check_branch
      %83 = sbr.rel (0) target = $region37
    $region36: #{tpu_custom_call.1} parent=1 // pred_region
      _
    $region37: #{tpu_custom_call.1} parent=1 // pred_fallthru
      _
    // Predicated region
    $region38: #{tpu_custom_call.1} parent=1 // pred_check
      _
    $region39: #{tpu_custom_call.1} parent=1 // pred_check_branch
      %85 = sbr.rel (0) target = $region41
    $region40: #{tpu_custom_call.1} parent=1 // pred_region
      %86 = dma.done [#allocation3], 128
    $region41: #{tpu_custom_call.1} parent=1 // pred_fallthru
      _
    // Predicated region
    $region42: #{tpu_custom_call.1} parent=1 // pred_check
      _
    $region43: #{tpu_custom_call.1} parent=1 // pred_check_branch
      %88 = sbr.rel (0) target = $region45
    $region44: #{tpu_custom_call.1} parent=1 // pred_region
      %89 = dma.done [#allocation6], 512
    $region45: #{tpu_custom_call.1} parent=1 // pred_fallthru
      _
    // Predicated region
    $region46: #{tpu_custom_call.1} parent=1 // pred_check
      _
    $region47: #{tpu_custom_call.1} parent=1 // pred_check_branch
      %91 = sbr.rel (0) target = $region49
    $region48: #{tpu_custom_call.1} parent=1 // pred_region
      %92 = dma.done [#allocation6], 1024
    $region49: #{tpu_custom_call.1} parent=1 // pred_fallthru
      _
    // Predicated region
    $region50: #{tpu_custom_call.1} parent=1 // pred_check
      _
    $region51: #{tpu_custom_call.1} parent=1 // pred_check_branch
      %94 = sbr.rel (0) target = $region53
    $region52: #{tpu_custom_call.1} parent=1 // pred_region
      %95 = dma.done [#allocation9], 1024
    $region53: #{tpu_custom_call.1} parent=1 // pred_fallthru
      _
    // Predicated region
    $region54: #{tpu_custom_call.1} parent=1 // pred_check
      _
    $region55: #{tpu_custom_call.1} parent=1 // pred_check_branch
      %97 = sbr.rel (0) target = $region57
    $region56: #{tpu_custom_call.1} parent=1 // pred_region
      %98 = dma.done [#allocation9], 1024
    $region57: #{tpu_custom_call.1} parent=1 // pred_fallthru
      _
    %v99 = vld [vmem:[#allocation2] sm:$0xff]
    %v100 = vld [vmem:[#allocation5] sm:$0xff]
    %v101 = vld [vmem:[#allocation5 + $0x8] sm:$0xff]
    %v102 = vld [vmem:[#allocation5 + $0x10] sm:$0xff]
    %v103 = vld [vmem:[#allocation5 + $0x18] sm:$0xff]
    %v104 = vld [vmem:[%s2] sm:$0x1]
    %v106 = vlaneseq
    %v107 = vshrl.u32 %v106, 7
    %v108 = vsub.s32 0, %v107
    %v109 = vrot.slane %v104, %v108
    %vm111 = vcmask 261120
    %v113 = vsel %vm111, %v99, 0
    %115 = vmatprep.subr.mxu0 0.0
    %116 = vmatpush1.msra.mxu0 %v100
    %117 = vmatprep.subr.mxu0 0.0
    %118 = vmatpush1.msra.mxu0 %v101
    %119 = vmatprep.subr.mxu0 0.0
    %120 = vmatpush1.msra.mxu0 %v102
    %121 = vmatprep.subr.mxu0 0.0
    %122 = vmatpush1.msra.mxu0 %v103
    %123 = vmatprep.subr.mxu0 0.0
    %124 = vmatpush1.msra.mxu0 0.0
    %125 = vmatprep.subr.mxu0 0.0
    %126 = vmatpush1.msra.mxu0 0.0
    %127 = vmatprep.subr.mxu0 0.0
    %128 = vmatpush1.msra.mxu0 0.0
    %129 = vmatprep.subr.mxu0 0.0
    %130 = vmatpush1.msra.mxu0 0.0
    %131 = vmatprep.subr.mxu0 0.0
    %132 = vmatpush1.msra.mxu0 0.0
    %133 = vmatprep.subr.mxu0 0.0
    %134 = vmatpush1.msra.mxu0 0.0
    %135 = vmatprep.subr.mxu0 0.0
    %136 = vmatpush1.msra.mxu0 0.0
    %137 = vmatprep.subr.mxu0 0.0
    %138 = vmatpush1.msra.mxu0 0.0
    %139 = vmatprep.subr.mxu0 0.0
    %140 = vmatpush1.msra.mxu0 0.0
    %141 = vmatprep.subr.mxu0 0.0
    %142 = vmatpush1.msra.mxu0 0.0
    %143 = vmatprep.subr.mxu0 0.0
    %144 = vmatpush1.msra.mxu0 0.0
    %145 = vmatprep.subr.mxu0 0.0
    %146 = vmatpush1.msra.mxu0 0.0
    %147 = vmatprep.subr.mxu0 0.0
    %148 = vmatpush1.msra.mxu0 0.0
    %149 = vmatprep.subr.mxu0 0.0
    %150 = vmatpush1.msra.mxu0 0.0
    %151 = vmatprep.subr.mxu0 0.0
    %152 = vmatpush1.msra.mxu0 0.0
    %153 = vmatprep.subr.mxu0 0.0
    %154 = vmatpush1.msra.mxu0 0.0
    %155 = vmatprep.subr.mxu0 0.0
    %156 = vmatpush1.msra.mxu0 0.0
    %157 = vmatprep.subr.mxu0 0.0
    %158 = vmatpush1.msra.mxu0 0.0
    %159 = vmatprep.subr.mxu0 0.0
    %160 = vmatpush1.msra.mxu0 0.0
    %161 = vmatprep.subr.mxu0 0.0
    %162 = vmatpush1.msra.mxu0 0.0
    %163 = vmatprep.subr.mxu0 0.0
    %164 = vmatpush1.msra.mxu0 0.0
    %165 = vmatprep.subr.mxu0 0.0
    %166 = vmatpush1.msra.mxu0 0.0
    %167 = vmatprep.subr.mxu0 0.0
    %168 = vmatpush1.msra.mxu0 0.0
    %169 = vmatprep.subr.mxu0 0.0
    %170 = vmatpush1.msra.mxu0 0.0
    %171 = vmatprep.subr.mxu0 0.0
    %172 = vmatpush1.msra.mxu0 0.0
    %173 = vmatprep.subr.mxu0 0.0
    %174 = vmatpush1.msra.mxu0 0.0
    %175 = vmatprep.subr.mxu0 0.0
    %176 = vmatpush1.msra.mxu0 0.0
    %177 = vmatprep.subr.mxu0 0.0
    %178 = vmatpush1.msra.mxu0 0.0
    %179 = vmatprep.mubr.f32.mxu0 0.0
    %180 = vmatmul.mubr.f32.gmra.mrb[0].mxu0 %v113
    %v181 = vpop.f32.mrb[0].mxu0
    %v182 = vadd.f32 %v109, %v181
    %v183 = vpop.f32.mrb[0].mxu0
    %184 = vdwg.mxu0
    %v185 = vmax.f32 %v182, 0.0
    %v186 = vld [vmem:[#allocation7] sm:$0xff]
    %v187 = vld [vmem:[#allocation7 + $0x8] sm:$0xff]
    %v188 = vld [vmem:[#allocation7 + $0x10] sm:$0xff]
    %v189 = vld [vmem:[#allocation7 + $0x18] sm:$0xff]
    %v190 = vld [vmem:[#allocation7 + $0x20] sm:$0xff]
    %v191 = vld [vmem:[#allocation7 + $0x28] sm:$0xff]
    %v192 = vld [vmem:[#allocation7 + $0x30] sm:$0xff]
    %v193 = vld [vmem:[#allocation7 + $0x38] sm:$0xff]
    %v194 = vld [vmem:[%s4] sm:$0x1]
    %v196 = vlaneseq
    %v197 = vshrl.u32 %v196, 7
    %v198 = vsub.s32 0, %v197
    %v199 = vrot.slane %v194, %v198
    %vm201 = vcmask 523264
    %v203 = vsel %vm201, %v185, 0
    %205 = vmatprep.subr.mxu0 0.0
    %206 = vmatpush1.msra.mxu0 %v186
    %207 = vmatprep.subr.mxu0 0.0
    %208 = vmatpush1.msra.mxu0 %v187
    %209 = vmatprep.subr.mxu0 0.0
    %210 = vmatpush1.msra.mxu0 %v188
    %211 = vmatprep.subr.mxu0 0.0
    %212 = vmatpush1.msra.mxu0 %v189
    %213 = vmatprep.subr.mxu0 0.0
    %214 = vmatpush1.msra.mxu0 %v190
    %215 = vmatprep.subr.mxu0 0.0
    %216 = vmatpush1.msra.mxu0 %v191
    %217 = vmatprep.subr.mxu0 0.0
    %218 = vmatpush1.msra.mxu0 %v192
    %219 = vmatprep.subr.mxu0 0.0
    %220 = vmatpush1.msra.mxu0 %v193
    %221 = vmatprep.subr.mxu0 0.0
    %222 = vmatpush1.msra.mxu0 0.0
    %223 = vmatprep.subr.mxu0 0.0
    %224 = vmatpush1.msra.mxu0 0.0
    %225 = vmatprep.subr.mxu0 0.0
    %226 = vmatpush1.msra.mxu0 0.0
    %227 = vmatprep.subr.mxu0 0.0
    %228 = vmatpush1.msra.mxu0 0.0
    %229 = vmatprep.subr.mxu0 0.0
    %230 = vmatpush1.msra.mxu0 0.0
    %231 = vmatprep.subr.mxu0 0.0
    %232 = vmatpush1.msra.mxu0 0.0
    %233 = vmatprep.subr.mxu0 0.0
    %234 = vmatpush1.msra.mxu0 0.0
    %235 = vmatprep.subr.mxu0 0.0
    %236 = vmatpush1.msra.mxu0 0.0
    %237 = vmatprep.subr.mxu0 0.0
    %238 = vmatpush1.msra.mxu0 0.0
    %239 = vmatprep.subr.mxu0 0.0
    %240 = vmatpush1.msra.mxu0 0.0
    %241 = vmatprep.subr.mxu0 0.0
    %242 = vmatpush1.msra.mxu0 0.0
    %243 = vmatprep.subr.mxu0 0.0
    %244 = vmatpush1.msra.mxu0 0.0
    %245 = vmatprep.subr.mxu0 0.0
    %246 = vmatpush1.msra.mxu0 0.0
    %247 = vmatprep.subr.mxu0 0.0
    %248 = vmatpush1.msra.mxu0 0.0
    %249 = vmatprep.subr.mxu0 0.0
    %250 = vmatpush1.msra.mxu0 0.0
    %251 = vmatprep.subr.mxu0 0.0
    %252 = vmatpush1.msra.mxu0 0.0
    %253 = vmatprep.subr.mxu0 0.0
    %254 = vmatpush1.msra.mxu0 0.0
    %255 = vmatprep.subr.mxu0 0.0
    %256 = vmatpush1.msra.mxu0 0.0
    %257 = vmatprep.subr.mxu0 0.0
    %258 = vmatpush1.msra.mxu0 0.0
    %259 = vmatprep.subr.mxu0 0.0
    %260 = vmatpush1.msra.mxu0 0.0
    %261 = vmatprep.subr.mxu0 0.0
    %262 = vmatpush1.msra.mxu0 0.0
    %263 = vmatprep.subr.mxu0 0.0
    %264 = vmatpush1.msra.mxu0 0.0
    %265 = vmatprep.subr.mxu0 0.0
    %266 = vmatpush1.msra.mxu0 0.0
    %267 = vmatprep.subr.mxu0 0.0
    %268 = vmatpush1.msra.mxu0 0.0
    %269 = vmatprep.mubr.f32.mxu0 0.0
    %270 = vmatmul.mubr.f32.gmra.mrb[0].mxu0 %v203
    %v271 = vpop.f32.mrb[0].mxu0
    %v272 = vadd.f32 %v199, %v271
    %v273 = vpop.f32.mrb[0].mxu0
    %274 = vdwg.mxu0
    %v275 = vmax.f32 %v272, 0.0
    %v276 = vld [vmem:[#allocation8] sm:$0xff]
    %v277 = vld [vmem:[#allocation8 + $0x8] sm:$0xff]
    %v278 = vld [vmem:[#allocation8 + $0x10] sm:$0xff]
    %v279 = vld [vmem:[#allocation8 + $0x18] sm:$0xff]
    %v280 = vld [vmem:[#allocation8 + $0x20] sm:$0xff]
    %v281 = vld [vmem:[#allocation8 + $0x28] sm:$0xff]
    %v282 = vld [vmem:[#allocation8 + $0x30] sm:$0xff]
    %v283 = vld [vmem:[#allocation8 + $0x38] sm:$0xff]
    %v284 = vld [vmem:[%s6] sm:$0x1]
    %v286 = vlaneseq
    %v287 = vshrl.u32 %v286, 7
    %v288 = vsub.s32 0, %v287
    %v289 = vrot.slane %v284, %v288
    %v292 = vsel %vm201, %v275, 0
    %294 = vmatprep.subr.mxu0 0.0
    %295 = vmatpush1.msra.mxu0 %v276
    %296 = vmatprep.subr.mxu0 0.0
    %297 = vmatpush1.msra.mxu0 %v277
    %298 = vmatprep.subr.mxu0 0.0
    %299 = vmatpush1.msra.mxu0 %v278
    %300 = vmatprep.subr.mxu0 0.0
    %301 = vmatpush1.msra.mxu0 %v279
    %302 = vmatprep.subr.mxu0 0.0
    %303 = vmatpush1.msra.mxu0 %v280
    %304 = vmatprep.subr.mxu0 0.0
    %305 = vmatpush1.msra.mxu0 %v281
    %306 = vmatprep.subr.mxu0 0.0
    %307 = vmatpush1.msra.mxu0 %v282
    %308 = vmatprep.subr.mxu0 0.0
    %309 = vmatpush1.msra.mxu0 %v283
    %310 = vmatprep.subr.mxu0 0.0
    %311 = vmatpush1.msra.mxu0 0.0
    %312 = vmatprep.subr.mxu0 0.0
    %313 = vmatpush1.msra.mxu0 0.0
    %314 = vmatprep.subr.mxu0 0.0
    %315 = vmatpush1.msra.mxu0 0.0
    %316 = vmatprep.subr.mxu0 0.0
    %317 = vmatpush1.msra.mxu0 0.0
    %318 = vmatprep.subr.mxu0 0.0
    %319 = vmatpush1.msra.mxu0 0.0
    %320 = vmatprep.subr.mxu0 0.0
    %321 = vmatpush1.msra.mxu0 0.0
    %322 = vmatprep.subr.mxu0 0.0
    %323 = vmatpush1.msra.mxu0 0.0
    %324 = vmatprep.subr.mxu0 0.0
    %325 = vmatpush1.msra.mxu0 0.0
    %326 = vmatprep.subr.mxu0 0.0
    %327 = vmatpush1.msra.mxu0 0.0
    %328 = vmatprep.subr.mxu0 0.0
    %329 = vmatpush1.msra.mxu0 0.0
    %330 = vmatprep.subr.mxu0 0.0
    %331 = vmatpush1.msra.mxu0 0.0
    %332 = vmatprep.subr.mxu0 0.0
    %333 = vmatpush1.msra.mxu0 0.0
    %334 = vmatprep.subr.mxu0 0.0
    %335 = vmatpush1.msra.mxu0 0.0
    %336 = vmatprep.subr.mxu0 0.0
    %337 = vmatpush1.msra.mxu0 0.0
    %338 = vmatprep.subr.mxu0 0.0
    %339 = vmatpush1.msra.mxu0 0.0
    %340 = vmatprep.subr.mxu0 0.0
    %341 = vmatpush1.msra.mxu0 0.0
    %342 = vmatprep.subr.mxu0 0.0
    %343 = vmatpush1.msra.mxu0 0.0
    %344 = vmatprep.subr.mxu0 0.0
    %345 = vmatpush1.msra.mxu0 0.0
    %346 = vmatprep.subr.mxu0 0.0
    %347 = vmatpush1.msra.mxu0 0.0
    %348 = vmatprep.subr.mxu0 0.0
    %349 = vmatpush1.msra.mxu0 0.0
    %350 = vmatprep.subr.mxu0 0.0
    %351 = vmatpush1.msra.mxu0 0.0
    %352 = vmatprep.subr.mxu0 0.0
    %353 = vmatpush1.msra.mxu0 0.0
    %354 = vmatprep.subr.mxu0 0.0
    %355 = vmatpush1.msra.mxu0 0.0
    %356 = vmatprep.subr.mxu0 0.0
    %357 = vmatpush1.msra.mxu0 0.0
    %358 = vmatprep.mubr.f32.mxu0 0.0
    %359 = vmatmul.mubr.f32.gmra.mrb[0].mxu0 %v292
    %v360 = vpop.f32.mrb[0].mxu0
    %v361 = vadd.f32 %v289, %v360
    %v362 = vpop.f32.mrb[0].mxu0
    %363 = vdwg.mxu0
    %v364 = vmax.f32 %v361, 0.0
    %v365 = vld [vmem:[#allocation10] sm:$0xff]
    %v366 = vld [vmem:[#allocation10 + $0x8] sm:$0xff]
    %v367 = vld [vmem:[#allocation10 + $0x10] sm:$0xff]
    %v368 = vld [vmem:[#allocation10 + $0x18] sm:$0xff]
    %v369 = vld [vmem:[#allocation10 + $0x20] sm:$0xff]
    %v370 = vld [vmem:[#allocation10 + $0x28] sm:$0xff]
    %v371 = vld [vmem:[#allocation10 + $0x30] sm:$0xff]
    %v372 = vld [vmem:[#allocation10 + $0x38] sm:$0xff]
    %v373 = vld [vmem:[%s8] sm:$0x1]
    %v375 = vlaneseq
    %v376 = vshrl.u32 %v375, 7
    %v377 = vsub.s32 0, %v376
    %v378 = vrot.slane %v373, %v377
    %v381 = vsel %vm201, %v364, 0
    %383 = vmatprep.subr.mxu0 0.0
    %384 = vmatpush1.msra.mxu0 %v365
    %385 = vmatprep.subr.mxu0 0.0
    %386 = vmatpush1.msra.mxu0 %v366
    %387 = vmatprep.subr.mxu0 0.0
    %388 = vmatpush1.msra.mxu0 %v367
    %389 = vmatprep.subr.mxu0 0.0
    %390 = vmatpush1.msra.mxu0 %v368
    %391 = vmatprep.subr.mxu0 0.0
    %392 = vmatpush1.msra.mxu0 %v369
    %393 = vmatprep.subr.mxu0 0.0
    %394 = vmatpush1.msra.mxu0 %v370
    %395 = vmatprep.subr.mxu0 0.0
    %396 = vmatpush1.msra.mxu0 %v371
    %397 = vmatprep.subr.mxu0 0.0
    %398 = vmatpush1.msra.mxu0 %v372
    %399 = vmatprep.subr.mxu0 0.0
    %400 = vmatpush1.msra.mxu0 0.0
    %401 = vmatprep.subr.mxu0 0.0
    %402 = vmatpush1.msra.mxu0 0.0
    %403 = vmatprep.subr.mxu0 0.0
    %404 = vmatpush1.msra.mxu0 0.0
    %405 = vmatprep.subr.mxu0 0.0
    %406 = vmatpush1.msra.mxu0 0.0
    %407 = vmatprep.subr.mxu0 0.0
    %408 = vmatpush1.msra.mxu0 0.0
    %409 = vmatprep.subr.mxu0 0.0
    %410 = vmatpush1.msra.mxu0 0.0
    %411 = vmatprep.subr.mxu0 0.0
    %412 = vmatpush1.msra.mxu0 0.0
    %413 = vmatprep.subr.mxu0 0.0
    %414 = vmatpush1.msra.mxu0 0.0
    %415 = vmatprep.subr.mxu0 0.0
    %416 = vmatpush1.msra.mxu0 0.0
    %417 = vmatprep.subr.mxu0 0.0
    %418 = vmatpush1.msra.mxu0 0.0
    %419 = vmatprep.subr.mxu0 0.0
    %420 = vmatpush1.msra.mxu0 0.0
    %421 = vmatprep.subr.mxu0 0.0
    %422 = vmatpush1.msra.mxu0 0.0
    %423 = vmatprep.subr.mxu0 0.0
    %424 = vmatpush1.msra.mxu0 0.0
    %425 = vmatprep.subr.mxu0 0.0
    %426 = vmatpush1.msra.mxu0 0.0
    %427 = vmatprep.subr.mxu0 0.0
    %428 = vmatpush1.msra.mxu0 0.0
    %429 = vmatprep.subr.mxu0 0.0
    %430 = vmatpush1.msra.mxu0 0.0
    %431 = vmatprep.subr.mxu0 0.0
    %432 = vmatpush1.msra.mxu0 0.0
    %433 = vmatprep.subr.mxu0 0.0
    %434 = vmatpush1.msra.mxu0 0.0
    %435 = vmatprep.subr.mxu0 0.0
    %436 = vmatpush1.msra.mxu0 0.0
    %437 = vmatprep.subr.mxu0 0.0
    %438 = vmatpush1.msra.mxu0 0.0
    %439 = vmatprep.subr.mxu0 0.0
    %440 = vmatpush1.msra.mxu0 0.0
    %441 = vmatprep.subr.mxu0 0.0
    %442 = vmatpush1.msra.mxu0 0.0
    %443 = vmatprep.subr.mxu0 0.0
    %444 = vmatpush1.msra.mxu0 0.0
    %445 = vmatprep.subr.mxu0 0.0
    %446 = vmatpush1.msra.mxu0 0.0
    %447 = vmatprep.mubr.f32.mxu0 0.0
    %448 = vmatmul.mubr.f32.gmra.mrb[0].mxu0 %v381
    %v449 = vpop.f32.mrb[0].mxu0
    %v450 = vadd.f32 %v378, %v449
    %v451 = vpop.f32.mrb[0].mxu0
    %452 = vdwg.mxu0
    %v453 = vxor.u32 %v450, 2147483648
    %v454 = vmul.f32 %v453, 1.442695
    %v455 = vpow.pop %v454
    %v456 = vadd.f32 %v455, 1.0
    %v457 = vrcp.pop %v456
    %v458 = vmul.f32 1.0, %v457
    %459 = vst [vmem:[#allocation11] sm:$0xff] %v458
    // Predicated region
    $region58: #{tpu_custom_call.1} parent=1 // pred_check
      _
    $region59: #{tpu_custom_call.1} parent=1 // pred_check_branch
      %461 = sbr.rel (0) target = $region61
    $region60: #{tpu_custom_call.1} parent=1 // pred_region
      %s463 = ssub.s32 128, 128
      %464 = vsyncadd [#allocation4], %s463
      %s466 = sshll.u32 [#allocation11], 4
      %s467 = int_to_ptr.vmem [resolvable:$true] %s466
      %469 = dma.vmem_to_hbm [thread:$0]  %s467, 128, %s9, [#allocation4]
    $region61: #{tpu_custom_call.1} parent=1 // pred_fallthru
      _
    // Predicated region
    $region62: #{tpu_custom_call.1} parent=1 // pred_check
      _
    $region63: #{tpu_custom_call.1} parent=1 // pred_check_branch
      %471 = sbr.rel (0) target = $region65
    $region64: #{tpu_custom_call.1} parent=1 // pred_region
      %472 = dma.done [#allocation4], 128
    $region65: #{tpu_custom_call.1} parent=1 // pred_fallthru
      _
    %473 = vsyncpa [#allocation3], 1
    %474 = vsyncpa [#allocation6], 1
    %475 = vsyncpa [#allocation9], 1
    %476 = vsyncpa [#allocation4], 1

// kernel: tpu_custom_call.1
$region0: #{tpu_custom_call.1}
  #allocation0 [shape = 'u32[]', space=smem, size = 0x4, offset = 0x4, fixed_abs, tag = 'smem constant byte address 0x4 - core index']
  #allocation1 [shape = 'u32[144,128]{1,0:T(1,128)}', space=vmem, size = 0x12000, scoped, tag = 'internal scratch']
  %s0 = inlined_call_operand.hbm [shape: f32[8,32], index: 0, kind: input, shape index: {}]
  %s1 = inlined_call_operand.hbm [shape: f32[32,64], index: 1, kind: input, shape index: {}]
  %s2 = inlined_call_operand.vmem [shape: f32[1,64], index: 2, kind: input, shape index: {}]
  %s3 = inlined_call_operand.hbm [shape: f32[64,64], index: 3, kind: input, shape index: {}]
  %s4 = inlined_call_operand.vmem [shape: f32[1,64], index: 4, kind: input, shape index: {}]
  %s5 = inlined_call_operand.hbm [shape: f32[64,64], index: 5, kind: input, shape index: {}]
  %s6 = inlined_call_operand.vmem [shape: f32[1,64], index: 6, kind: input, shape index: {}]
  %s7 = inlined_call_operand.hbm [shape: f32[64,128], index: 7, kind: input, shape index: {}]
  %s8 = inlined_call_operand.vmem [shape: f32[1,128], index: 8, kind: input, shape index: {}]
  %s9 = inlined_call_operand.hbm [shape: f32[8,128], index: 9, kind: output, shape index: {}]
  %s10 = sld [smem:[#allocation0]]
  $region66: #{tpu_custom_call.1} parent=0
    _
  %s12 = ssub.s32 1, %s10
  %s13 = scalar_select 0, %s12, %s10
  $region1: #{tpu_custom_call.1} parent=0
    #allocation2 [shape = 'u8[4096]{0}', space=vmem, size = 0x1000, scoped, tag = 'input window, operand 0, single buffered']
    #allocation3 [shape = 's32[1]{0}', space=sflag, size = 0x4, scoped, tag = 'scoped memory for tpu_custom_call.1']
    #allocation4 [shape = 's32[1]{0}', space=sflag, size = 0x4, scoped, tag = 'scoped memory for tpu_custom_call.1']
    #allocation5 [shape = 'u8[16384]{0}', space=vmem, size = 0x4000, scoped, tag = 'input window, operand 1, single buffered']
    #allocation6 [shape = 's32[1]{0}', space=sflag, size = 0x4, scoped, tag = 'scoped memory for tpu_custom_call.1']
    #allocation7 [shape = 'u8[32768]{0}', space=vmem, size = 0x8000, scoped, tag = 'input window, operand 3, single buffered']
    #allocation8 [shape = 'u8[32768]{0}', space=vmem, size = 0x8000, scoped, tag = 'input window, operand 5, single buffered']
    #allocation9 [shape = 's32[1]{0}', space=sflag, size = 0x4, scoped, tag = 'scoped memory for tpu_custom_call.1']
    #allocation10 [shape = 'u8[32768]{0}', space=vmem, size = 0x8000, scoped, tag = 'input window, operand 7, single buffered']
    #allocation11 [shape = 'u8[4096]{0}', space=vmem, size = 0x1000, scoped, tag = 'output window, operand 0, single buffered']
    %14 = vsyncpa [#allocation3], 0
    %15 = vsyncpa [#allocation6], 0
    %16 = vsyncpa [#allocation9], 0
    %17 = vsyncpa [#allocation4], 0
    // Predicated region
    $region2: #{tpu_custom_call.1} parent=1 // pred_check
      _
    $region3: #{tpu_custom_call.1} parent=1 // pred_check_branch
      %19 = sbr.rel (0) target = $region5
    $region4: #{tpu_custom_call.1} parent=1 // pred_region
      %s21 = ssub.s32 128, 128
      %22 = vsyncadd [#allocation3], %s21
      %s24 = sshll.u32 [#allocation2], 4
      %s25 = int_to_ptr.vmem [resolvable:$true] %s24
      %27 = dma.hbm_to_vmem [thread:$0]  %s0, 128, %s25, [#allocation3]
    $region5: #{tpu_custom_call.1} parent=1 // pred_fallthru
      _
    // Predicated region
    $region6: #{tpu_custom_call.1} parent=1 // pred_check
      _
    $region7: #{tpu_custom_call.1} parent=1 // pred_check_branch
      %29 = sbr.rel (0) target = $region9
    $region8: #{tpu_custom_call.1} parent=1 // pred_region
      %s31 = ssub.s32 512, 512
      %32 = vsyncadd [#allocation6], %s31
      %s33 = sshll.u32 [#allocation5], 4
      %s34 = int_to_ptr.vmem [resolvable:$true] %s33
      %39 = dma.hbm_to_vmem [thread:$0]  %s1, 512, %s34, [#allocation6], 128, 128, 8
    $region9: #{tpu_custom_call.1} parent=1 // pred_fallthru
      _
    // Predicated region
    $region10: #{tpu_custom_call.1} parent=1 // pred_check
      _
    $region11: #{tpu_custom_call.1} parent=1 // pred_check_branch
      %41 = sbr.rel (0) target = $region13
    $region12: #{tpu_custom_call.1} parent=1 // pred_region
      _
    $region13: #{tpu_custom_call.1} parent=1 // pred_fallthru
      _
    // Predicated region
    $region14: #{tpu_custom_call.1} parent=1 // pred_check
      _
    $region15: #{tpu_custom_call.1} parent=1 // pred_check_branch
      %43 = sbr.rel (0) target = $region17
    $region16: #{tpu_custom_call.1} parent=1 // pred_region
      %s45 = ssub.s32 1024, 1024
      %46 = vsyncadd [#allocation6], %s45
      %s47 = sshll.u32 [#allocation7], 4
      %s48 = int_to_ptr.vmem [resolvable:$true] %s47
      %53 = dma.hbm_to_vmem [thread:$0]  %s3, 1024, %s48, [#allocation6], 128, 128, 8
    $region17: #{tpu_custom_call.1} parent=1 // pred_fallthru
      _
    // Predicated region
    $region18: #{tpu_custom_call.1} parent=1 // pred_check
      _
    $region19: #{tpu_custom_call.1} parent=1 // pred_check_branch
      %55 = sbr.rel (0) target = $region21
    $region20: #{tpu_custom_call.1} parent=1 // pred_region
      _
    $region21: #{tpu_custom_call.1} parent=1 // pred_fallthru
      _
    // Predicated region
    $region22: #{tpu_custom_call.1} parent=1 // pred_check
      _
    $region23: #{tpu_custom_call.1} parent=1 // pred_check_branch
      %57 = sbr.rel (0) target = $region25
    $region24: #{tpu_custom_call.1} parent=1 // pred_region
      %s59 = ssub.s32 1024, 1024
      %60 = vsyncadd [#allocation9], %s59
      %s61 = sshll.u32 [#allocation8], 4
      %s62 = int_to_ptr.vmem [resolvable:$true] %s61
      %67 = dma.hbm_to_vmem [thread:$0]  %s5, 1024, %s62, [#allocation9], 128, 128, 8
    $region25: #{tpu_custom_call.1} parent=1 // pred_fallthru
      _
    // Predicated region
    $region26: #{tpu_custom_call.1} parent=1 // pred_check
      _
    $region27: #{tpu_custom_call.1} parent=1 // pred_check_branch
      %69 = sbr.rel (0) target = $region29
    $region28: #{tpu_custom_call.1} parent=1 // pred_region
      _
    $region29: #{tpu_custom_call.1} parent=1 // pred_fallthru
      _
    // Predicated region
    $region30: #{tpu_custom_call.1} parent=1 // pred_check
      _
    $region31: #{tpu_custom_call.1} parent=1 // pred_check_branch
      %71 = sbr.rel (0) target = $region33
    $region32: #{tpu_custom_call.1} parent=1 // pred_region
      %s73 = ssub.s32 1024, 1024
      %74 = vsyncadd [#allocation9], %s73
      %s75 = sshll.u32 [#allocation10], 4
      %s76 = int_to_ptr.vmem [resolvable:$true] %s75
      %81 = dma.hbm_to_vmem [thread:$0]  %s7, 1024, %s76, [#allocation9], 128, 128, 8
    $region33: #{tpu_custom_call.1} parent=1 // pred_fallthru
      _
    // Predicated region
    $region34: #{tpu_custom_call.1} parent=1 // pred_check
      _
    $region35: #{tpu_custom_call.1} parent=1 // pred_check_branch
      %83 = sbr.rel (0) target = $region37
    $region36: #{tpu_custom_call.1} parent=1 // pred_region
      _
    $region37: #{tpu_custom_call.1} parent=1 // pred_fallthru
      _
    // Predicated region
    $region38: #{tpu_custom_call.1} parent=1 // pred_check
      _
    $region39: #{tpu_custom_call.1} parent=1 // pred_check_branch
      %85 = sbr.rel (0) target = $region41
    $region40: #{tpu_custom_call.1} parent=1 // pred_region
      %86 = dma.done [#allocation3], 128
    $region41: #{tpu_custom_call.1} parent=1 // pred_fallthru
      _
    // Predicated region
    $region42: #{tpu_custom_call.1} parent=1 // pred_check
      _
    $region43: #{tpu_custom_call.1} parent=1 // pred_check_branch
      %88 = sbr.rel (0) target = $region45
    $region44: #{tpu_custom_call.1} parent=1 // pred_region
      %89 = dma.done [#allocation6], 512
    $region45: #{tpu_custom_call.1} parent=1 // pred_fallthru
      _
    // Predicated region
    $region46: #{tpu_custom_call.1} parent=1 // pred_check
      _
    $region47: #{tpu_custom_call.1} parent=1 // pred_check_branch
      %91 = sbr.rel (0) target = $region49
    $region48: #{tpu_custom_call.1} parent=1 // pred_region
      %92 = dma.done [#allocation6], 1024
    $region49: #{tpu_custom_call.1} parent=1 // pred_fallthru
      _
    // Predicated region
    $region50: #{tpu_custom_call.1} parent=1 // pred_check
      _
    $region51: #{tpu_custom_call.1} parent=1 // pred_check_branch
      %94 = sbr.rel (0) target = $region53
    $region52: #{tpu_custom_call.1} parent=1 // pred_region
      %95 = dma.done [#allocation9], 1024
    $region53: #{tpu_custom_call.1} parent=1 // pred_fallthru
      _
    // Predicated region
    $region54: #{tpu_custom_call.1} parent=1 // pred_check
      _
    $region55: #{tpu_custom_call.1} parent=1 // pred_check_branch
      %97 = sbr.rel (0) target = $region57
    $region56: #{tpu_custom_call.1} parent=1 // pred_region
      %98 = dma.done [#allocation9], 1024
    $region57: #{tpu_custom_call.1} parent=1 // pred_fallthru
      _
    %v99 = vld [vmem:[#allocation2] sm:$0xff]
    %v100 = vld [vmem:[#allocation5] sm:$0xff]
    %v101 = vld [vmem:[#allocation5 + $0x8] sm:$0xff]
    %v102 = vld [vmem:[#allocation5 + $0x10] sm:$0xff]
    %v103 = vld [vmem:[#allocation5 + $0x18] sm:$0xff]
    %v104 = vld [vmem:[%s2] sm:$0x1]
    %v106 = vlaneseq
    %v107 = vshrl.u32 %v106, 7
    %v108 = vsub.s32 0, %v107
    %v109 = vrot.slane %v104, %v108
    %vm111 = vcmask 261120
    %v113 = vsel %vm111, %v99, 0
    %115 = vmatprep.subr.mxu0 0.0
    %116 = vmatpush1.msra.mxu0 %v100
    %117 = vmatprep.subr.mxu0 0.0
    %118 = vmatpush1.msra.mxu0 %v101
    %119 = vmatprep.subr.mxu0 0.0
    %120 = vmatpush1.msra.mxu0 %v102
    %121 = vmatprep.subr.mxu0 0.0
    %122 = vmatpush1.msra.mxu0 %v103
    %123 = vmatprep.subr.mxu0 0.0
    %124 = vmatpush1.msra.mxu0 0.0
    %125 = vmatprep.subr.mxu0 0.0
    %126 = vmatpush1.msra.mxu0 0.0
    %127 = vmatprep.subr.mxu0 0.0
    %128 = vmatpush1.msra.mxu0 0.0
    %129 = vmatprep.subr.mxu0 0.0
    %130 = vmatpush1.msra.mxu0 0.0
    %131 = vmatprep.subr.mxu0 0.0
    %132 = vmatpush1.msra.mxu0 0.0
    %133 = vmatprep.subr.mxu0 0.0
    %134 = vmatpush1.msra.mxu0 0.0
    %135 = vmatprep.subr.mxu0 0.0
    %136 = vmatpush1.msra.mxu0 0.0
    %137 = vmatprep.subr.mxu0 0.0
    %138 = vmatpush1.msra.mxu0 0.0
    %139 = vmatprep.subr.mxu0 0.0
    %140 = vmatpush1.msra.mxu0 0.0
    %141 = vmatprep.subr.mxu0 0.0
    %142 = vmatpush1.msra.mxu0 0.0
    %143 = vmatprep.subr.mxu0 0.0
    %144 = vmatpush1.msra.mxu0 0.0
    %145 = vmatprep.subr.mxu0 0.0
    %146 = vmatpush1.msra.mxu0 0.0
    %147 = vmatprep.subr.mxu0 0.0
    %148 = vmatpush1.msra.mxu0 0.0
    %149 = vmatprep.subr.mxu0 0.0
    %150 = vmatpush1.msra.mxu0 0.0
    %151 = vmatprep.subr.mxu0 0.0
    %152 = vmatpush1.msra.mxu0 0.0
    %153 = vmatprep.subr.mxu0 0.0
    %154 = vmatpush1.msra.mxu0 0.0
    %155 = vmatprep.subr.mxu0 0.0
    %156 = vmatpush1.msra.mxu0 0.0
    %157 = vmatprep.subr.mxu0 0.0
    %158 = vmatpush1.msra.mxu0 0.0
    %159 = vmatprep.subr.mxu0 0.0
    %160 = vmatpush1.msra.mxu0 0.0
    %161 = vmatprep.subr.mxu0 0.0
    %162 = vmatpush1.msra.mxu0 0.0
    %163 = vmatprep.subr.mxu0 0.0
    %164 = vmatpush1.msra.mxu0 0.0
    %165 = vmatprep.subr.mxu0 0.0
    %166 = vmatpush1.msra.mxu0 0.0
    %167 = vmatprep.subr.mxu0 0.0
    %168 = vmatpush1.msra.mxu0 0.0
    %169 = vmatprep.subr.mxu0 0.0
    %170 = vmatpush1.msra.mxu0 0.0
    %171 = vmatprep.subr.mxu0 0.0
    %172 = vmatpush1.msra.mxu0 0.0
    %173 = vmatprep.subr.mxu0 0.0
    %174 = vmatpush1.msra.mxu0 0.0
    %175 = vmatprep.subr.mxu0 0.0
    %176 = vmatpush1.msra.mxu0 0.0
    %177 = vmatprep.subr.mxu0 0.0
    %178 = vmatpush1.msra.mxu0 0.0
    %179 = vmatprep.mubr.f32.mxu0 0.0
    %180 = vmatmul.mubr.f32.gmra.mrb[0].mxu0 %v113
    %v181 = vpop.f32.mrb[0].mxu0
    %v182 = vadd.f32 %v109, %v181
    %v183 = vpop.f32.mrb[0].mxu0
    %184 = vdwg.mxu0
    %v185 = vmax.f32 %v182, 0.0
    %v186 = vld [vmem:[#allocation7] sm:$0xff]
    %v187 = vld [vmem:[#allocation7 + $0x8] sm:$0xff]
    %v188 = vld [vmem:[#allocation7 + $0x10] sm:$0xff]
    %v189 = vld [vmem:[#allocation7 + $0x18] sm:$0xff]
    %v190 = vld [vmem:[#allocation7 + $0x20] sm:$0xff]
    %v191 = vld [vmem:[#allocation7 + $0x28] sm:$0xff]
    %v192 = vld [vmem:[#allocation7 + $0x30] sm:$0xff]
    %v193 = vld [vmem:[#allocation7 + $0x38] sm:$0xff]
    %v194 = vld [vmem:[%s4] sm:$0x1]
    %v196 = vlaneseq
    %v197 = vshrl.u32 %v196, 7
    %v198 = vsub.s32 0, %v197
    %v199 = vrot.slane %v194, %v198
    %vm201 = vcmask 523264
    %v203 = vsel %vm201, %v185, 0
    %205 = vmatprep.subr.mxu0 0.0
    %206 = vmatpush1.msra.mxu0 %v186
    %207 = vmatprep.subr.mxu0 0.0
    %208 = vmatpush1.msra.mxu0 %v187
    %209 = vmatprep.subr.mxu0 0.0
    %210 = vmatpush1.msra.mxu0 %v188
    %211 = vmatprep.subr.mxu0 0.0
    %212 = vmatpush1.msra.mxu0 %v189
    %213 = vmatprep.subr.mxu0 0.0
    %214 = vmatpush1.msra.mxu0 %v190
    %215 = vmatprep.subr.mxu0 0.0
    %216 = vmatpush1.msra.mxu0 %v191
    %217 = vmatprep.subr.mxu0 0.0
    %218 = vmatpush1.msra.mxu0 %v192
    %219 = vmatprep.subr.mxu0 0.0
    %220 = vmatpush1.msra.mxu0 %v193
    %221 = vmatprep.subr.mxu0 0.0
    %222 = vmatpush1.msra.mxu0 0.0
    %223 = vmatprep.subr.mxu0 0.0
    %224 = vmatpush1.msra.mxu0 0.0
    %225 = vmatprep.subr.mxu0 0.0
    %226 = vmatpush1.msra.mxu0 0.0
    %227 = vmatprep.subr.mxu0 0.0
    %228 = vmatpush1.msra.mxu0 0.0
    %229 = vmatprep.subr.mxu0 0.0
    %230 = vmatpush1.msra.mxu0 0.0
    %231 = vmatprep.subr.mxu0 0.0
    %232 = vmatpush1.msra.mxu0 0.0
    %233 = vmatprep.subr.mxu0 0.0
    %234 = vmatpush1.msra.mxu0 0.0
    %235 = vmatprep.subr.mxu0 0.0
    %236 = vmatpush1.msra.mxu0 0.0
    %237 = vmatprep.subr.mxu0 0.0
    %238 = vmatpush1.msra.mxu0 0.0
    %239 = vmatprep.subr.mxu0 0.0
    %240 = vmatpush1.msra.mxu0 0.0
    %241 = vmatprep.subr.mxu0 0.0
    %242 = vmatpush1.msra.mxu0 0.0
    %243 = vmatprep.subr.mxu0 0.0
    %244 = vmatpush1.msra.mxu0 0.0
    %245 = vmatprep.subr.mxu0 0.0
    %246 = vmatpush1.msra.mxu0 0.0
    %247 = vmatprep.subr.mxu0 0.0
    %248 = vmatpush1.msra.mxu0 0.0
    %249 = vmatprep.subr.mxu0 0.0
    %250 = vmatpush1.msra.mxu0 0.0
    %251 = vmatprep.subr.mxu0 0.0
    %252 = vmatpush1.msra.mxu0 0.0
    %253 = vmatprep.subr.mxu0 0.0
    %254 = vmatpush1.msra.mxu0 0.0
    %255 = vmatprep.subr.mxu0 0.0
    %256 = vmatpush1.msra.mxu0 0.0
    %257 = vmatprep.subr.mxu0 0.0
    %258 = vmatpush1.msra.mxu0 0.0
    %259 = vmatprep.subr.mxu0 0.0
    %260 = vmatpush1.msra.mxu0 0.0
    %261 = vmatprep.subr.mxu0 0.0
    %262 = vmatpush1.msra.mxu0 0.0
    %263 = vmatprep.subr.mxu0 0.0
    %264 = vmatpush1.msra.mxu0 0.0
    %265 = vmatprep.subr.mxu0 0.0
    %266 = vmatpush1.msra.mxu0 0.0
    %267 = vmatprep.subr.mxu0 0.0
    %268 = vmatpush1.msra.mxu0 0.0
    %269 = vmatprep.mubr.f32.mxu0 0.0
    %270 = vmatmul.mubr.f32.gmra.mrb[0].mxu0 %v203
    %v271 = vpop.f32.mrb[0].mxu0
    %v272 = vadd.f32 %v199, %v271
    %v273 = vpop.f32.mrb[0].mxu0
    %274 = vdwg.mxu0
    %v275 = vmax.f32 %v272, 0.0
    %v276 = vld [vmem:[#allocation8] sm:$0xff]
    %v277 = vld [vmem:[#allocation8 + $0x8] sm:$0xff]
    %v278 = vld [vmem:[#allocation8 + $0x10] sm:$0xff]
    %v279 = vld [vmem:[#allocation8 + $0x18] sm:$0xff]
    %v280 = vld [vmem:[#allocation8 + $0x20] sm:$0xff]
    %v281 = vld [vmem:[#allocation8 + $0x28] sm:$0xff]
    %v282 = vld [vmem:[#allocation8 + $0x30] sm:$0xff]
    %v283 = vld [vmem:[#allocation8 + $0x38] sm:$0xff]
    %v284 = vld [vmem:[%s6] sm:$0x1]
    %v286 = vlaneseq
    %v287 = vshrl.u32 %v286, 7
    %v288 = vsub.s32 0, %v287
    %v289 = vrot.slane %v284, %v288
    %v292 = vsel %vm201, %v275, 0
    %294 = vmatprep.subr.mxu0 0.0
    %295 = vmatpush1.msra.mxu0 %v276
    %296 = vmatprep.subr.mxu0 0.0
    %297 = vmatpush1.msra.mxu0 %v277
    %298 = vmatprep.subr.mxu0 0.0
    %299 = vmatpush1.msra.mxu0 %v278
    %300 = vmatprep.subr.mxu0 0.0
    %301 = vmatpush1.msra.mxu0 %v279
    %302 = vmatprep.subr.mxu0 0.0
    %303 = vmatpush1.msra.mxu0 %v280
    %304 = vmatprep.subr.mxu0 0.0
    %305 = vmatpush1.msra.mxu0 %v281
    %306 = vmatprep.subr.mxu0 0.0
    %307 = vmatpush1.msra.mxu0 %v282
    %308 = vmatprep.subr.mxu0 0.0
    %309 = vmatpush1.msra.mxu0 %v283
    %310 = vmatprep.subr.mxu0 0.0
    %311 = vmatpush1.msra.mxu0 0.0
    %312 = vmatprep.subr.mxu0 0.0
    %313 = vmatpush1.msra.mxu0 0.0
    %314 = vmatprep.subr.mxu0 0.0
    %315 = vmatpush1.msra.mxu0 0.0
    %316 = vmatprep.subr.mxu0 0.0
    %317 = vmatpush1.msra.mxu0 0.0
    %318 = vmatprep.subr.mxu0 0.0
    %319 = vmatpush1.msra.mxu0 0.0
    %320 = vmatprep.subr.mxu0 0.0
    %321 = vmatpush1.msra.mxu0 0.0
    %322 = vmatprep.subr.mxu0 0.0
    %323 = vmatpush1.msra.mxu0 0.0
    %324 = vmatprep.subr.mxu0 0.0
    %325 = vmatpush1.msra.mxu0 0.0
    %326 = vmatprep.subr.mxu0 0.0
    %327 = vmatpush1.msra.mxu0 0.0
    %328 = vmatprep.subr.mxu0 0.0
    %329 = vmatpush1.msra.mxu0 0.0
    %330 = vmatprep.subr.mxu0 0.0
    %331 = vmatpush1.msra.mxu0 0.0
    %332 = vmatprep.subr.mxu0 0.0
    %333 = vmatpush1.msra.mxu0 0.0
    %334 = vmatprep.subr.mxu0 0.0
    %335 = vmatpush1.msra.mxu0 0.0
    %336 = vmatprep.subr.mxu0 0.0
    %337 = vmatpush1.msra.mxu0 0.0
    %338 = vmatprep.subr.mxu0 0.0
    %339 = vmatpush1.msra.mxu0 0.0
    %340 = vmatprep.subr.mxu0 0.0
    %341 = vmatpush1.msra.mxu0 0.0
    %342 = vmatprep.subr.mxu0 0.0
    %343 = vmatpush1.msra.mxu0 0.0
    %344 = vmatprep.subr.mxu0 0.0
    %345 = vmatpush1.msra.mxu0 0.0
    %346 = vmatprep.subr.mxu0 0.0
    %347 = vmatpush1.msra.mxu0 0.0
    %348 = vmatprep.subr.mxu0 0.0
    %349 = vmatpush1.msra.mxu0 0.0
    %350 = vmatprep.subr.mxu0 0.0
    %351 = vmatpush1.msra.mxu0 0.0
    %352 = vmatprep.subr.mxu0 0.0
    %353 = vmatpush1.msra.mxu0 0.0
    %354 = vmatprep.subr.mxu0 0.0
    %355 = vmatpush1.msra.mxu0 0.0
    %356 = vmatprep.subr.mxu0 0.0
    %357 = vmatpush1.msra.mxu0 0.0
    %358 = vmatprep.mubr.f32.mxu0 0.0
    %359 = vmatmul.mubr.f32.gmra.mrb[0].mxu0 %v292
    %v360 = vpop.f32.mrb[0].mxu0
    %v361 = vadd.f32 %v289, %v360
    %v362 = vpop.f32.mrb[0].mxu0
    %363 = vdwg.mxu0
    %v364 = vmax.f32 %v361, 0.0
    %v365 = vld [vmem:[#allocation10] sm:$0xff]
    %v366 = vld [vmem:[#allocation10 + $0x8] sm:$0xff]
    %v367 = vld [vmem:[#allocation10 + $0x10] sm:$0xff]
    %v368 = vld [vmem:[#allocation10 + $0x18] sm:$0xff]
    %v369 = vld [vmem:[#allocation10 + $0x20] sm:$0xff]
    %v370 = vld [vmem:[#allocation10 + $0x28] sm:$0xff]
    %v371 = vld [vmem:[#allocation10 + $0x30] sm:$0xff]
    %v372 = vld [vmem:[#allocation10 + $0x38] sm:$0xff]
    %v373 = vld [vmem:[%s8] sm:$0x1]
    %v375 = vlaneseq
    %v376 = vshrl.u32 %v375, 7
    %v377 = vsub.s32 0, %v376
    %v378 = vrot.slane %v373, %v377
    %v381 = vsel %vm201, %v364, 0
    %383 = vmatprep.subr.mxu0 0.0
    %384 = vmatpush1.msra.mxu0 %v365
    %385 = vmatprep.subr.mxu0 0.0
    %386 = vmatpush1.msra.mxu0 %v366
    %387 = vmatprep.subr.mxu0 0.0
    %388 = vmatpush1.msra.mxu0 %v367
    %389 = vmatprep.subr.mxu0 0.0
    %390 = vmatpush1.msra.mxu0 %v368
    %391 = vmatprep.subr.mxu0 0.0
    %392 = vmatpush1.msra.mxu0 %v369
    %393 = vmatprep.subr.mxu0 0.0
    %394 = vmatpush1.msra.mxu0 %v370
    %395 = vmatprep.subr.mxu0 0.0
    %396 = vmatpush1.msra.mxu0 %v371
    %397 = vmatprep.subr.mxu0 0.0
    %398 = vmatpush1.msra.mxu0 %v372
    %399 = vmatprep.subr.mxu0 0.0
    %400 = vmatpush1.msra.mxu0 0.0
    %401 = vmatprep.subr.mxu0 0.0
    %402 = vmatpush1.msra.mxu0 0.0
    %403 = vmatprep.subr.mxu0 0.0
    %404 = vmatpush1.msra.mxu0 0.0
    %405 = vmatprep.subr.mxu0 0.0
    %406 = vmatpush1.msra.mxu0 0.0
    %407 = vmatprep.subr.mxu0 0.0
    %408 = vmatpush1.msra.mxu0 0.0
    %409 = vmatprep.subr.mxu0 0.0
    %410 = vmatpush1.msra.mxu0 0.0
    %411 = vmatprep.subr.mxu0 0.0
    %412 = vmatpush1.msra.mxu0 0.0
    %413 = vmatprep.subr.mxu0 0.0
    %414 = vmatpush1.msra.mxu0 0.0
    %415 = vmatprep.subr.mxu0 0.0
    %416 = vmatpush1.msra.mxu0 0.0
    %417 = vmatprep.subr.mxu0 0.0
    %418 = vmatpush1.msra.mxu0 0.0
    %419 = vmatprep.subr.mxu0 0.0
    %420 = vmatpush1.msra.mxu0 0.0
    %421 = vmatprep.subr.mxu0 0.0
    %422 = vmatpush1.msra.mxu0 0.0
    %423 = vmatprep.subr.mxu0 0.0
    %424 = vmatpush1.msra.mxu0 0.0
    %425 = vmatprep.subr.mxu0 0.0
    %426 = vmatpush1.msra.mxu0 0.0
    %427 = vmatprep.subr.mxu0 0.0
    %428 = vmatpush1.msra.mxu0 0.0
    %429 = vmatprep.subr.mxu0 0.0
    %430 = vmatpush1.msra.mxu0 0.0
    %431 = vmatprep.subr.mxu0 0.0
    %432 = vmatpush1.msra.mxu0 0.0
    %433 = vmatprep.subr.mxu0 0.0
    %434 = vmatpush1.msra.mxu0 0.0
    %435 = vmatprep.subr.mxu0 0.0
    %436 = vmatpush1.msra.mxu0 0.0
    %437 = vmatprep.subr.mxu0 0.0
    %438 = vmatpush1.msra.mxu0 0.0
    %439 = vmatprep.subr.mxu0 0.0
    %440 = vmatpush1.msra.mxu0 0.0
    %441 = vmatprep.subr.mxu0 0.0
    %442 = vmatpush1.msra.mxu0 0.0
    %443 = vmatprep.subr.mxu0 0.0
    %444 = vmatpush1.msra.mxu0 0.0
    %445 = vmatprep.subr.mxu0 0.0
    %446 = vmatpush1.msra.mxu0 0.0
    %447 = vmatprep.mubr.f32.mxu0 0.0
    %448 = vmatmul.mubr.f32.gmra.mrb[0].mxu0 %v381
    %v449 = vpop.f32.mrb[0].mxu0
    %v450 = vadd.f32 %v378, %v449
    %v451 = vpop.f32.mrb[0].mxu0
    %452 = vdwg.mxu0
    %v453 = vxor.u32 %v450, 2147483648
    %v454 = vmul.f32 %v453, 1.442695
    %v455 = vpow.pop %v454
    %v456 = vadd.f32 %v455, 1.0
    %v457 = vrcp.pop %v456
    %v458 = vmul.f32 1.0, %v457
    %459 = vst [vmem:[#allocation11] sm:$0xff] %v458
    // Predicated region
    $region58: #{tpu_custom_call.1} parent=1 // pred_check
      _
    $region59: #{tpu_custom_call.1} parent=1 // pred_check_branch
      %461 = sbr.rel (0) target = $region61
    $region60: #{tpu_custom_call.1} parent=1 // pred_region
      %s463 = ssub.s32 128, 128
      %464 = vsyncadd [#allocation4], %s463
      %s466 = sshll.u32 [#allocation11], 4
      %s467 = int_to_ptr.vmem [resolvable:$true] %s466
      %469 = dma.vmem_to_hbm [thread:$0]  %s467, 128, %s9, [#allocation4]
    $region61: #{tpu_custom_call.1} parent=1 // pred_fallthru
      _
    // Predicated region
    $region62: #{tpu_custom_call.1} parent=1 // pred_check
      _
    $region63: #{tpu_custom_call.1} parent=1 // pred_check_branch
      %471 = sbr.rel (0) target = $region65
    $region64: #{tpu_custom_call.1} parent=1 // pred_region
      %472 = dma.done [#allocation4], 128
    $region65: #{tpu_custom_call.1} parent=1 // pred_fallthru
      _
    %473 = vsyncpa [#allocation3], 1
    %474 = vsyncpa [#allocation6], 1
    %475 = vsyncpa [#allocation9], 1
    %476 = vsyncpa [#allocation4], 1

</llo_original>
